<compile_context>
chip_gen: v5e
topology: v5e:2x2
jax: 0.10.0
libtpu: 0.0.40
codegen_flags: <defaults>
</compile_context>

<pallas_src>
import functools

import jax
import jax.numpy as jnp
from jax.experimental import pallas as pl
from jax.experimental.pallas import tpu as pltpu

LANE = 128
# Single-buffer budget for keeping the transformed features VMEM-resident
# (pipelining may double-buffer it); 6 MiB keeps the worst-case working set
# comfortably inside a 32 MiB scoped VMEM limit on every generation (v7x incl).
_RESIDENT_VW_BYTES = 6 * 1024 * 1024


def _round_up(x, m):
    return (x + m - 1) // m * m


def _pad_to(arr, shape):
    return jnp.pad(arr, [(0, s - d) for d, s in zip(arr.shape, shape)])


def _plan_tiles(n, tm, tk):
    """Pick (tm, tk, n_pad) with tm | tk | n_pad.

    * rows/cols pad only up to tm (no lcm(tm, tk) padding blow-up),
    * tk is the largest multiple of tm that divides n_pad and is <= requested,
    * tm is halved (down to 128) if needed so the parallel row axis has >= 2
      blocks (both v7x TensorCores get work; v5e/v6e are single-TC).
    """
    n128 = _round_up(max(n, 1), LANE)
    tm = max(LANE, min(_round_up(tm, LANE), n128))
    n_pad = _round_up(n128, tm)
    tk_req = max(tm, min(_round_up(tk, LANE), n_pad))
    tk = tm
    for f in range(n_pad // tm, 0, -1):
        cand = f * tm
        if cand <= tk_req and n_pad % cand == 0:
            tk = cand
            break
    while n_pad // tm < 2 and tm > LANE and tm % (2 * LANE) == 0:
        tm //= 2
    return tm, tk, n_pad


# ----------------------------- Pallas kernel ------------------------------- #
def _gcn_agg_kernel(a_ref, vw_ref, b_ref, o_ref, acc_ref, *,
                    activation, num_valid, tk, resident_v):
    """act(A_hat @ VW + b) for one (tm, d) output row block.

    grid = (row blocks [parallel], contraction blocks [arbitrary, last]).
    acc_ref carries the f32 partial sums of A_hat @ VW across k.
    """
    k = pl.program_id(1)

    @pl.when(k == 0)
    def _init():
        acc_ref[...] = jnp.zeros_like(acc_ref)

    if resident_v:
        # VW is a single VMEM-resident block; slice the k-th contraction chunk.
        start = pl.multiple_of(k * tk, tk)
        vw = vw_ref[pl.ds(start, tk), :]
    else:
        vw = vw_ref[...]

    # bf16 MXU inputs, f32 accumulation.
    acc_ref[...] += jnp.dot(a_ref[...], vw, preferred_element_type=jnp.float32)

    @pl.when(k == pl.num_programs(1) - 1)
    def _finalize():
        z = acc_ref[...] + b_ref[...]
        if activation == "relu":
            o_ref[...] = jnp.maximum(z, 0.0).astype(o_ref.dtype)
        else:  # masked log_softmax over the first `num_valid` (real) columns
            col = jax.lax.broadcasted_iota(jnp.int32, z.shape, 1)
            z = jnp.where(col < num_valid, z, jnp.float32(-1e30))
            m = jnp.max(z, axis=1, keepdims=True)
            zs = z - m
            lse = jnp.log(jnp.sum(jnp.exp(zs), axis=1, keepdims=True))
            o_ref[...] = (zs - lse).astype(o_ref.dtype)


def _gcn_aggregate(a_p, vw_p, b_p, *, activation, num_valid, out_dtype, tm, tk):
    n_pad = a_p.shape[0]
    d = vw_p.shape[1]
    grid = (n_pad // tm, n_pad // tk)

    # Keep the transformed features fully VMEM-resident when they fit: removes
    # the per-row-block re-stream of VW from HBM entirely (~128/tm of the
    # A_hat bytes otherwise).  Falls back to streaming (tk, d) blocks.
    resident_v = vw_p.size * vw_p.dtype.itemsize <= _RESIDENT_VW_BYTES
    if resident_v:
        vw_spec = pl.BlockSpec((n_pad, d), lambda i, k: (0, 0))
    else:
        vw_spec = pl.BlockSpec((tk, d), lambda i, k: (k, 0))

    kernel = functools.partial(_gcn_agg_kernel, activation=activation,
                               num_valid=num_valid, tk=tk,
                               resident_v=resident_v)

    flops = 2 * n_pad * n_pad * d
    transcendentals = n_pad * (d + 1) if activation == "log_softmax" else 0
    vw_passes = 1 if resident_v else grid[0]
    bytes_accessed = int(a_p.size * a_p.dtype.itemsize
                         + vw_p.size * vw_p.dtype.itemsize * vw_passes
                         + b_p.size * b_p.dtype.itemsize
                         + n_pad * d * jnp.dtype(out_dtype).itemsize)

    return pl.pallas_call(
        kernel,
        out_shape=jax.ShapeDtypeStruct((n_pad, d), out_dtype),
        grid_spec=pltpu.PrefetchScalarGridSpec(
            num_scalar_prefetch=0,
            grid=grid,
            in_specs=[
                # A_hat tile: the dominant HBM stream.  (Optional tunable once
                # tiles are large: pipeline_mode=pl.Buffered(3) to hide DMA
                # ramp at row-block boundaries; default 2 buffers kept here.)
                pl.BlockSpec((tm, tk), lambda i, k: (i, k)),
                vw_spec,                                    # transformed feats
                pl.BlockSpec((1, d), lambda i, k: (0, 0)),  # bias
            ],
            out_specs=pl.BlockSpec((tm, d), lambda i, k: (i, 0)),
            scratch_shapes=[pltpu.VMEM((tm, d), jnp.float32)],
        ),
        compiler_params=pltpu.CompilerParams(
            # Row blocks independent -> megacore-shard on v7x; contraction
            # axis carries the accumulator -> arbitrary (and last).
            dimension_semantics=("parallel", "arbitrary"),
            # Safe on v5e/v6e/v7x; worst-case working set (2x A tile + 2x
            # resident VW + acc + out) stays well under this.
            vmem_limit_bytes=32 * 1024 * 1024,
        ),
        cost_estimate=pl.CostEstimate(flops=flops,
                                      transcendentals=transcendentals,
                                      bytes_accessed=bytes_accessed),
    )(a_p, vw_p, b_p)


# ------------------------------ JAX glue ----------------------------------- #
def build_norm_adj(edge_index, num_nodes, *, n_pad=None, dtype=jnp.float32):
    """Dense GCN-normalized adjacency D^{-1/2}(A + I)D^{-1/2}.

    Built directly at the padded shape and the requested (streaming) dtype so
    the wrapper never runs extra pad / cast passes over the N^2 array.
    TODO(synk): PyG's gcn_norm uses add_remaining_self_loops; this adds the
    self-loop unconditionally and sums duplicate edges (fidelity nit only).
    """
    if n_pad is None:
        n_pad = num_nodes
    src, dst = edge_index[0], edge_index[1]
    loop = jnp.arange(num_nodes, dtype=edge_index.dtype)
    src = jnp.concatenate([src, loop])
    dst = jnp.concatenate([dst, loop])
    deg = jnp.zeros((num_nodes,), jnp.float32).at[dst].add(1.0)
    dinv = jnp.where(deg > 0, 1.0 / jnp.sqrt(deg), 0.0)
    # Duplicate edges accumulate at `dtype` (negligible vs bf16 quantization).
    w = (dinv[dst] * dinv[src]).astype(dtype)
    return jnp.zeros((n_pad, n_pad), dtype).at[dst, src].add(w)


def gcn_forward(x, edge_index, w1, b1, w2, b2, *, tm=512, tk=1024,
                adj_dtype=jnp.bfloat16):
    """GCN forward (eval mode): log_softmax(A relu(A (x W1) + b1) W2 + b2)."""
    n = x.shape[0]
    hidden = w1.shape[1]
    num_classes = w2.shape[1]
    h_pad = _round_up(hidden, LANE)
    c_pad = _round_up(num_classes, LANE)

    tm, tk, n_pad = _plan_tiles(n, tm, tk)

    # Normalized adjacency, built at the padded shape and streaming dtype.
    a_p = build_norm_adj(edge_index, n, n_pad=n_pad, dtype=adj_dtype)

    # Layer-1 feature transform (tiny XLA matmul), 128-lane padded, bf16 MXU
    # input.  Reassociation keeps the kernel epilogue to bias + activation.
    vw1 = _pad_to(jnp.dot(x, w1, preferred_element_type=jnp.float32),
                  (n_pad, h_pad)).astype(jnp.bfloat16)
    b1_p = _pad_to(jnp.reshape(b1, (1, -1)), (1, h_pad)).astype(jnp.float32)

    h = _gcn_aggregate(a_p, vw1, b1_p, activation="relu", num_valid=hidden,
                       out_dtype=jnp.bfloat16, tm=tm, tk=tk)

    # TODO(synk): dropout is the identity here (eval-mode semantics); a
    # training-mode path would use pltpu.prng_seed + pltpu.prng_random_bits.

    # Layer-2 feature transform: H (n_pad, h_pad) @ W2 (padded), tiny.
    w2_p = _pad_to(w2, (h_pad, c_pad)).astype(jnp.float32)
    vw2 = jnp.dot(h, w2_p,
                  preferred_element_type=jnp.float32).astype(jnp.bfloat16)
    b2_p = _pad_to(jnp.reshape(b2, (1, -1)), (1, c_pad)).astype(jnp.float32)

    logp = _gcn_aggregate(a_p, vw2, b2_p, activation="log_softmax",
                          num_valid=num_classes, out_dtype=jnp.float32,
                          tm=tm, tk=tk)
    return logp[:n, :num_classes]


def glorot(key, shape):
    fan_in, fan_out = shape
    lim = jnp.sqrt(6.0 / (fan_in + fan_out))
    return jax.random.uniform(key, shape, jnp.float32, -lim, lim)


def reference_forward(a_hat, x, w1, b1, w2, b2):
    h = a_hat @ (x @ w1) + b1
    h = jnp.maximum(h, 0.0)
    z = a_hat @ (h @ w2) + b2
    return jax.nn.log_softmax(z, axis=1)


if __name__ == "__main__":
    key = jax.random.PRNGKey(0)
    k_x, k_e, k_w1, k_w2 = jax.random.split(key, 4)

    # Small synthetic graph (N=200 pads to 256 -> grid (2, 1) with the planner,
    # exercising the parallel row axis, the resident-VW path and the epilogue).
    num_nodes = 200
    num_feat = 8
    hidden = 16
    num_classes = 4
    num_edges = 600

    x = jax.random.normal(k_x, (num_nodes, num_feat), jnp.float32)
    edge_index = jax.random.randint(k_e, (2, num_edges), 0, num_nodes,
                                    dtype=jnp.int32)

    # deterministic parameters (GCNConv: glorot weight, zero bias)
    w1 = glorot(k_w1, (num_feat, hidden))
    b1 = jnp.zeros((hidden,), jnp.float32)
    w2 = glorot(k_w2, (hidden, num_classes))
    b2 = jnp.zeros((num_classes,), jnp.float32)

    out = gcn_forward(x, edge_index, w1, b1, w2, b2)
    out = jax.block_until_ready(out)

    a_ref = build_norm_adj(edge_index, num_nodes)  # f32, unpadded (reference)
    ref = reference_forward(a_ref, x, w1, b1, w2, b2)
    assert out.shape == (num_nodes, num_classes)
    # bf16 streaming of A_hat / transformed features -> looser tolerance.
    assert jnp.allclose(out, ref, atol=3e-2, rtol=3e-2), \
        float(jnp.max(jnp.abs(out - ref)))

    print("KERNEL_OK")
</pallas_src>

<mosaic_0001>
module attributes {stable_mosaic.version = 11 : i64} {
  func.func @_gcn_agg_kernel(%arg0: i32, %arg1: i32, %arg2: memref<128x256xbf16, #tpu.memory_space<vmem>>, %arg3: memref<256x128xbf16, #tpu.memory_space<vmem>>, %arg4: memref<1x128xf32, #tpu.memory_space<vmem>>, %arg5: memref<128x128xbf16, #tpu.memory_space<vmem>>, %arg6: memref<128x128xf32, #tpu.memory_space<vmem>>) attributes {dimension_semantics = [#tpu.dimension_semantics<parallel>, #tpu.dimension_semantics<arbitrary>], iteration_bounds = array<i64: 2, 1>, scalar_prefetch = 0 : i64, scratch_operands = 1 : i64, tpu.core_type = #tpu.core_type<tc>, window_params = [{transform_indices = @transform_0, window_bounds = array<i64: 128, 256>}, {pipeline_mode = #tpu.pipeline_mode<synchronous>, transform_indices = @transform_1, window_bounds = array<i64: 256, 128>}, {pipeline_mode = #tpu.pipeline_mode<synchronous>, transform_indices = @transform_2, window_bounds = array<i64: 1, 128>}, {transform_indices = @transform_3, window_bounds = array<i64: 128, 128>}]} {
    %c0_i32 = arith.constant 0 : i32
    %0 = arith.cmpi eq, %arg1, %c0_i32 : i32
    %1 = arith.extui %0 : i1 to i32
    %c0_i32_0 = arith.constant 0 : i32
    %2 = arith.cmpi ne, %1, %c0_i32_0 : i32
    scf.if %2 {
      %cst_9 = arith.constant 0.000000e+00 : f32
      %15 = vector.broadcast %cst_9 : f32 to vector<128x128xf32>
      %c0_10 = arith.constant 0 : index
      %c0_11 = arith.constant 0 : index
      %16 = vector.load %arg6[%c0_10, %c0_11] : memref<128x128xf32, #tpu.memory_space<vmem>>, vector<128x128xf32>
      tpu.vector_store %arg6[%c0_10, %c0_11], %15 {strides = array<i32>} : memref<128x128xf32, #tpu.memory_space<vmem>>, vector<128x128xf32>,
    } else {
    }
    %c256_i32 = arith.constant 256 : i32
    %3 = arith.muli %arg1, %c256_i32 : i32
    %4 = tpu.assume_multiple %3, 256 : i32
    %5 = arith.index_cast %4 : i32 to index
    %c0 = arith.constant 0 : index
    %6 = vector.load %arg3[%5, %c0] : memref<256x128xbf16, #tpu.memory_space<vmem>>, vector<256x128xbf16>
    %c0_1 = arith.constant 0 : index
    %c0_2 = arith.constant 0 : index
    %7 = vector.load %arg6[%c0_1, %c0_2] : memref<128x128xf32, #tpu.memory_space<vmem>>, vector<128x128xf32>
    %c0_3 = arith.constant 0 : index
    %c0_4 = arith.constant 0 : index
    %8 = vector.load %arg2[%c0_3, %c0_4] : memref<128x256xbf16, #tpu.memory_space<vmem>>, vector<128x256xbf16>
    %cst = arith.constant dense<0.000000e+00> : vector<128x128xf32>
    %9 = tpu.matmul %8, %6, %cst {dimension_numbers = #tpu.dot_dimension_numbers<[1], [0], [0], [1], [0, 0, 1, 1], [], []>} : vector<128x256xbf16>, vector<256x128xbf16>, vector<128x128xf32> -> vector<128x128xf32>
    %10 = arith.addf %7, %9 : vector<128x128xf32>
    %c0_5 = arith.constant 0 : index
    %c0_6 = arith.constant 0 : index
    %11 = vector.load %arg6[%c0_5, %c0_6] : memref<128x128xf32, #tpu.memory_space<vmem>>, vector<128x128xf32>
    tpu.vector_store %arg6[%c0_5, %c0_6], %10 {strides = array<i32>} : memref<128x128xf32, #tpu.memory_space<vmem>>, vector<128x128xf32>,
    %c0_i32_7 = arith.constant 0 : i32
    %12 = arith.cmpi eq, %arg1, %c0_i32_7 : i32
    %13 = arith.extui %12 : i1 to i32
    %c0_i32_8 = arith.constant 0 : i32
    %14 = arith.cmpi ne, %13, %c0_i32_8 : i32
    scf.if %14 {
      %c0_9 = arith.constant 0 : index
      %c0_10 = arith.constant 0 : index
      %15 = vector.load %arg6[%c0_9, %c0_10] : memref<128x128xf32, #tpu.memory_space<vmem>>, vector<128x128xf32>
      %c0_11 = arith.constant 0 : index
      %c0_12 = arith.constant 0 : index
      %16 = vector.load %arg4[%c0_11, %c0_12] : memref<1x128xf32, #tpu.memory_space<vmem>>, vector<1x128xf32>
      %17 = vector.broadcast %16 : vector<1x128xf32> to vector<128x128xf32>
      %18 = arith.addf %15, %17 : vector<128x128xf32>
      %cst_13 = arith.constant 0.000000e+00 : f32
      %19 = vector.broadcast %cst_13 : f32 to vector<128x128xf32>
      %20 = arith.maximumf %18, %19 : vector<128x128xf32>
      %21 = arith.truncf %20 : vector<128x128xf32> to vector<128x128xbf16>
      %c0_14 = arith.constant 0 : index
      %c0_15 = arith.constant 0 : index
      %22 = vector.load %arg5[%c0_14, %c0_15] : memref<128x128xbf16, #tpu.memory_space<vmem>>, vector<128x128xbf16>
      tpu.vector_store %arg5[%c0_14, %c0_15], %21 {strides = array<i32>} : memref<128x128xbf16, #tpu.memory_space<vmem>>, vector<128x128xbf16>,
    } else {
    }
    return
  }
  func.func @transform_0(%arg0: i32, %arg1: i32) -> (i32, i32) {
    %c0_i32 = arith.constant 0 : i32
    return %arg0, %arg1 : i32, i32
  }
  func.func @transform_1(%arg0: i32, %arg1: i32) -> (i32, i32) {
    %c0_i32 = arith.constant 0 : i32
    %c0_i32_0 = arith.constant 0 : i32
    %c0_i32_1 = arith.constant 0 : i32
    return %c0_i32, %c0_i32_0 : i32, i32
  }
  func.func @transform_2(%arg0: i32, %arg1: i32) -> (i32, i32) {
    %c0_i32 = arith.constant 0 : i32
    %c0_i32_0 = arith.constant 0 : i32
    %c0_i32_1 = arith.constant 0 : i32
    return %c0_i32, %c0_i32_0 : i32, i32
  }
  func.func @transform_3(%arg0: i32, %arg1: i32) -> (i32, i32) {
    %c0_i32 = arith.constant 0 : i32
    %c0_i32_0 = arith.constant 0 : i32
    return %arg0, %c0_i32 : i32, i32
  }
}

</mosaic_0001>

<llo_original>
// kernel: tpu_custom_call.1
$region0: #{tpu_custom_call.1}
  #allocation0 [shape = 'u32[]', space=smem, size = 0x4, offset = 0x4, fixed_abs, tag = 'smem constant byte address 0x4 - core index']
  #allocation1 [shape = 'u32[72,128]{1,0:T(1,128)}', space=vmem, size = 0x9000, scoped, tag = 'internal scratch']
  #allocation2 [shape = 'f32[128,128]{1,0:T(8,128)}', space=vmem, size = 0x10000, scoped, tag = 'scratch operand']
  %s0 = inlined_call_operand.hbm [shape: bf16[256,256], index: 0, kind: input, shape index: {}]
  %s1 = inlined_call_operand.hbm [shape: bf16[256,128], index: 1, kind: input, shape index: {}]
  %s2 = inlined_call_operand.vmem [shape: f32[1,128], index: 2, kind: input, shape index: {}]
  %s3 = inlined_call_operand.hbm [shape: bf16[256,128], index: 3, kind: output, shape index: {}]
  %s4 = sld [smem:[#allocation0]]
  $region61: #{tpu_custom_call.1} parent=0
    _
  %s6 = ssub.s32 1, %s4
  %s7 = scalar_select 0, %s6, %s4
  $region1: #{tpu_custom_call.1} parent=0
    #allocation3 [shape = 'u8[131072]{0}', space=vmem, size = 0x20000, scoped, tag = 'input window, operand 0']
    #allocation4 [shape = 's32[2]{0}', space=sflag, size = 0x8, scoped, tag = 'scoped memory for tpu_custom_call.1']
    #allocation5 [shape = 's32[2]{0}', space=sflag, size = 0x8, scoped, tag = 'scoped memory for tpu_custom_call.1']
    #allocation6 [shape = 'u8[65536]{0}', space=vmem, size = 0x10000, scoped, tag = 'input window, operand 1, single buffered']
    #allocation7 [shape = 's32[1]{0}', space=sflag, size = 0x4, scoped, tag = 'scoped memory for tpu_custom_call.1']
    #allocation8 [shape = 'u8[65536]{0}', space=vmem, size = 0x10000, scoped, tag = 'output window, operand 0']
    %8 = vsyncpa [#allocation4], 0
    %s9 = scalar_lea.sflag [#allocation4], 1
    %10 = vsyncpa %s9, 0
    %11 = vsyncpa [#allocation7], 0
    %12 = vsyncpa [#allocation5], 0
    %s13 = scalar_lea.sflag [#allocation5], 1
    %14 = vsyncpa %s13, 0
    loop: start=0, step=1, limit=4
    $region2: #{tpu_custom_call.1} parent=1 // loop_pre_header
      _
    $region3: #{tpu_custom_call.1} parent=1 // loop_header
      %s16 = sphi 0, %s20
      %p17 = scmp.ge.s32.totalorder %s16, 4
      %s23 = sphi 0, %s35
      %s24 = sphi 0, %s31
      %s25 = sphi 0, %s23
      %s26 = sphi 0, %s24
      %s27 = sphi 0, %s25
      %s28 = sphi 0, %s26
      %s40 = sphi 0, %s42
      %s43 = sphi 0, %s40
      %s44 = sphi 0, %s43
      %s60 = sphi 0, %s44
      %s64 = sphi 0, %s64
      %s66 = sphi 0, %s64
      %s67 = sphi 0, %s66
      %s81 = sphi 0, %s67
      %s85 = sphi 0, %s85
      %s87 = sphi 0, %s85
      %s88 = sphi 0, %s87
      %s102 = sphi 0, %s88
      %s108 = sphi 0, %s110
      %s111 = sphi 0, %s108
      %s112 = sphi 0, %s111
      %s128 = sphi 0, %s112
    $region4: #{tpu_custom_call.1} parent=1 // loop_header_branch
      %19 = sbr.rel (%p17) target = $region8
    $region5: #{tpu_custom_call.1} parent=1 // loop_body
      %s21 = ssub.s32 %s16, 1
      %s22 = ssub.s32 %s16, 2
      %s29 = sadd.s32 1, %s24
      %p30 = scmp.ge.s32.totalorder %s29, 1
      %s31 = scalar_select %p30, 0, %s29
      %s32 = sadd.s32 1, %s23
      %s33 = scalar_select %p30, %s32, %s23
      %p34 = scmp.ge.s32.totalorder %s33, 2
      %s35 = scalar_select %p34, 0, %s33
      %s36 = ssub.s32 %s23, %s35
      %s37 = ssub.s32 %s24, %s31
      %s38 = sor.u32 %s36, %s37
      %p39 = scmp.eq.s32.totalorder %s38, 0
      %s41 = sadd.s32 %s40, 1
      %s42 = scalar_select %p39, %s40, %s41
      %p45 = pneg %p39
      %p46 = scmp.eq.s32.totalorder %s16, 1
      %p47 = por %p45, %p46
      %p48 = scmp.ne.s32.totalorder %s40, %s43
      %p49 = scmp.eq.s32.totalorder %s16, 0
      %p50 = por %p48, %p49
      %p51 = scmp.ne.s32.totalorder %s40, %s43
      %p52 = scmp.eq.s32.totalorder %s21, 1
      %p53 = por %p51, %p52
      %p54 = scmp.ne.s32.totalorder %s43, %s44
      %p55 = scmp.eq.s32.totalorder %s21, 0
      %p56 = por %p54, %p55
      %p57 = scmp.ne.s32.totalorder %s43, %s44
      %p58 = scmp.eq.s32.totalorder %s22, 1
      %p59 = por %p57, %p58
      %p61 = scmp.ne.s32.totalorder %s44, %s60
      %p62 = scmp.eq.s32.totalorder %s22, 0
      %p63 = por %p61, %p62
      %s65 = sadd.s32 %s64, 1
      %p68 = scmp.eq.s32.totalorder %s16, 1
      %p69 = scmp.ne.s32.totalorder %s64, %s66
      %p70 = scmp.eq.s32.totalorder %s16, 0
      %p71 = por %p69, %p70
      %p72 = scmp.ne.s32.totalorder %s64, %s66
      %p73 = scmp.eq.s32.totalorder %s21, 1
      %p74 = por %p72, %p73
      %p75 = scmp.ne.s32.totalorder %s66, %s67
      %p76 = scmp.eq.s32.totalorder %s21, 0
      %p77 = por %p75, %p76
      %p78 = scmp.ne.s32.totalorder %s66, %s67
      %p79 = scmp.eq.s32.totalorder %s22, 1
      %p80 = por %p78, %p79
      %p82 = scmp.ne.s32.totalorder %s67, %s81
      %p83 = scmp.eq.s32.totalorder %s22, 0
      %p84 = por %p82, %p83
      %s86 = sadd.s32 %s85, 1
      %p89 = scmp.eq.s32.totalorder %s16, 1
      %p90 = scmp.ne.s32.totalorder %s85, %s87
      %p91 = scmp.eq.s32.totalorder %s16, 0
      %p92 = por %p90, %p91
      %p93 = scmp.ne.s32.totalorder %s85, %s87
      %p94 = scmp.eq.s32.totalorder %s21, 1
      %p95 = por %p93, %p94
      %p96 = scmp.ne.s32.totalorder %s87, %s88
      %p97 = scmp.eq.s32.totalorder %s21, 0
      %p98 = por %p96, %p97
      %p99 = scmp.ne.s32.totalorder %s87, %s88
      %p100 = scmp.eq.s32.totalorder %s22, 1
      %p101 = por %p99, %p100
      %p103 = scmp.ne.s32.totalorder %s88, %s102
      %p104 = scmp.eq.s32.totalorder %s22, 0
      %p105 = por %p103, %p104
      %s106 = ssub.s32 %s23, %s35
      %p107 = scmp.eq.s32.totalorder %s106, 0
      %s109 = sadd.s32 %s108, 1
      %s110 = scalar_select %p107, %s108, %s109
      %p113 = pneg %p107
      %p114 = scmp.eq.s32.totalorder %s16, 1
      %p115 = por %p113, %p114
      %p116 = scmp.ne.s32.totalorder %s108, %s111
      %p117 = scmp.eq.s32.totalorder %s16, 0
      %p118 = por %p116, %p117
      %p119 = scmp.ne.s32.totalorder %s108, %s111
      %p120 = scmp.eq.s32.totalorder %s21, 1
      %p121 = por %p119, %p120
      %p122 = scmp.ne.s32.totalorder %s111, %s112
      %p123 = scmp.eq.s32.totalorder %s21, 0
      %p124 = por %p122, %p123
      %p125 = scmp.ne.s32.totalorder %s111, %s112
      %p126 = scmp.eq.s32.totalorder %s22, 1
      %p127 = por %p125, %p126
      %p129 = scmp.ne.s32.totalorder %s112, %s128
      %p130 = scmp.eq.s32.totalorder %s22, 0
      %p131 = por %p129, %p130
      %p132 = scmp.le.s32.totalorder 1, %s16
      %p133 = scmp.lt.s32.totalorder %s16, 3
      %p134 = pnand %p132, %p133
      %p135 = pneg %p134
      // Predicated region
      $region9: #{tpu_custom_call.1} parent=5 // pred_check
        _
      $region10: #{tpu_custom_call.1} parent=5 // pred_check_branch
        %137 = sbr.rel (%p134) target = $region12
      $region11: #{tpu_custom_call.1} parent=5 // pred_region
        %s138 = ssub.s32 %s16, 1
        // Predicated region
        $region13: #{tpu_custom_call.1} parent=11 // pred_check
          %p139 = pneg %p77
        $region14: #{tpu_custom_call.1} parent=11 // pred_check_branch
          %141 = sbr.rel (%p139) target = $region16
        $region15: #{tpu_custom_call.1} parent=11 // pred_region
          %143 = vsyncadd [#allocation7], 0
          %s144 = sshll.u32 %s1, 4
          %s145 = int_to_ptr.hbm [resolvable:$true] %s144
          %s146 = sshll.u32 [#allocation6], 4
          %s147 = int_to_ptr.vmem [resolvable:$true] %s146
          %152 = dma.hbm_to_vmem [thread:$0]  %s145, 2048, %s147, [#allocation7], 64, 64, 4
        $region16: #{tpu_custom_call.1} parent=11 // pred_fallthru
          _
        // Predicated region
        $region17: #{tpu_custom_call.1} parent=11 // pred_check
          %p153 = pneg %p98
        $region18: #{tpu_custom_call.1} parent=11 // pred_check_branch
          %155 = sbr.rel (%p153) target = $region20
        $region19: #{tpu_custom_call.1} parent=11 // pred_region
          _
        $region20: #{tpu_custom_call.1} parent=11 // pred_fallthru
          _
      $region12: #{tpu_custom_call.1} parent=5 // pred_fallthru
        _
      %p156 = scmp.lt.s32.totalorder %s16, 2
      // Predicated region
      $region21: #{tpu_custom_call.1} parent=5 // pred_check
        %p157 = pneg %p156
      $region22: #{tpu_custom_call.1} parent=5 // pred_check_branch
        %159 = sbr.rel (%p157) target = $region24
      $region23: #{tpu_custom_call.1} parent=5 // pred_region
        // Predicated region
        $region25: #{tpu_custom_call.1} parent=23 // pred_check
          %p160 = pneg %p50
        $region26: #{tpu_custom_call.1} parent=23 // pred_check_branch
          %162 = sbr.rel (%p160) target = $region28
        $region27: #{tpu_custom_call.1} parent=23 // pred_region
          %s163 = sand.u32 %s40, 1
          %s164 = scalar_lea.sflag [#allocation4], %s163
          %s165 = sand.u32 %s40, 1
          %s166 = smul.addr %s165, 128
          %s167 = scalar_lea.vmem [#allocation3], %s166
          %s168 = smul.u32 16, %s23
          %s169 = smul.u32 2, %s24
          %171 = vsyncadd %s164, 0
          %s172 = smul.addr %s168, 2
          %s173 = sadd.s32 %s169, %s172
          %s174 = smul.addr %s173, 4
          %s175 = scalar_lea.hbm %s0, %s174
          %s176 = sshll.u32 %s175, 4
          %s177 = int_to_ptr.hbm [resolvable:$true] %s176
          %s178 = sshll.u32 %s167, 4
          %s179 = int_to_ptr.vmem [resolvable:$true] %s178
          %184 = dma.hbm_to_vmem [thread:$0]  %s177, 2048, %s179, %s164, 128, 128, 8
        $region28: #{tpu_custom_call.1} parent=23 // pred_fallthru
          _
      $region24: #{tpu_custom_call.1} parent=5 // pred_fallthru
        _
      %p185 = scmp.le.s32.totalorder 1, %s16
      %p186 = scmp.lt.s32.totalorder %s16, 3
      %p187 = pnand %p185, %p186
      %p188 = pneg %p187
      // Predicated region
      $region29: #{tpu_custom_call.1} parent=5 // pred_check
        _
      $region30: #{tpu_custom_call.1} parent=5 // pred_check_branch
        %190 = sbr.rel (%p187) target = $region32
      $region31: #{tpu_custom_call.1} parent=5 // pred_region
        %s191 = ssub.s32 %s16, 1
        %s192 = sand.u32 %s43, 1
        %s193 = scalar_lea.sflag [#allocation4], %s192
        %s194 = sand.u32 %s43, 1
        %s195 = smul.addr %s194, 128
        %s196 = scalar_lea.vmem [#allocation3], %s195
        // Predicated region
        $region33: #{tpu_custom_call.1} parent=31 // pred_check
          %p197 = pneg %p56
        $region34: #{tpu_custom_call.1} parent=31 // pred_check_branch
          %199 = sbr.rel (%p197) target = $region36
        $region35: #{tpu_custom_call.1} parent=31 // pred_region
          %201 = dma.done %s193, 2048
        $region36: #{tpu_custom_call.1} parent=31 // pred_fallthru
          _
        // Predicated region
        $region37: #{tpu_custom_call.1} parent=31 // pred_check
          %p202 = pneg %p77
        $region38: #{tpu_custom_call.1} parent=31 // pred_check_branch
          %204 = sbr.rel (%p202) target = $region40
        $region39: #{tpu_custom_call.1} parent=31 // pred_region
          %206 = dma.done [#allocation7], 2048
        $region40: #{tpu_custom_call.1} parent=31 // pred_fallthru
          _
        %s207 = sand.u32 %s43, 1
        %s208 = scalar_lea.sflag [#allocation4], %s207
        %s209 = sand.u32 %s43, 1
        %s210 = smul.addr %s209, 128
        %s211 = scalar_lea.vmem [#allocation3], %s210
        %p212 = pneg %p56
        %p213 = pneg %p53
        %p214 = pneg %p77
        %p215 = pneg %p74
        %p216 = pneg %p98
        %p217 = pneg %p95
        %p218 = pneg %p124
        %p219 = pneg %p121
        %s220 = sand.u32 %s111, 1
        %s221 = scalar_lea.sflag [#allocation5], %s220
        %s222 = sand.u32 %s111, 1
        %s223 = smul.addr %s222, 64
        %s224 = scalar_lea.vmem [#allocation8], %s223
        %s225 = smul.u32 16, %s25
        %s226 = smul.u32 2, %s26
        %s227 = smul.u32 16, %s25
        %p228 = scmp.eq.s32.totalorder %s26, 0
        // Predicated region
        $region41: #{tpu_custom_call.1} parent=31 // pred_check
          %p229 = pneg %p228
        $region42: #{tpu_custom_call.1} parent=31 // pred_check_branch
          %231 = sbr.rel (%p229) target = $region44
        $region43: #{tpu_custom_call.1} parent=31 // pred_region
          %232 = vst [vmem:[#allocation2] sm:$0xff] 0.0
          %233 = vst [vmem:[#allocation2 + $0x8] sm:$0xff] 0.0
          %234 = vst [vmem:[#allocation2 + $0x10] sm:$0xff] 0.0
          %235 = vst [vmem:[#allocation2 + $0x18] sm:$0xff] 0.0
          %236 = vst [vmem:[#allocation2 + $0x20] sm:$0xff] 0.0
          %237 = vst [vmem:[#allocation2 + $0x28] sm:$0xff] 0.0
          %238 = vst [vmem:[#allocation2 + $0x30] sm:$0xff] 0.0
          %239 = vst [vmem:[#allocation2 + $0x38] sm:$0xff] 0.0
          %240 = vst [vmem:[#allocation2 + $0x40] sm:$0xff] 0.0
          %241 = vst [vmem:[#allocation2 + $0x48] sm:$0xff] 0.0
          %242 = vst [vmem:[#allocation2 + $0x50] sm:$0xff] 0.0
          %243 = vst [vmem:[#allocation2 + $0x58] sm:$0xff] 0.0
          %244 = vst [vmem:[#allocation2 + $0x60] sm:$0xff] 0.0
          %245 = vst [vmem:[#allocation2 + $0x68] sm:$0xff] 0.0
          %246 = vst [vmem:[#allocation2 + $0x70] sm:$0xff] 0.0
          %247 = vst [vmem:[#allocation2 + $0x78] sm:$0xff] 0.0
        $region44: #{tpu_custom_call.1} parent=31 // pred_fallthru
          _
        %s248 = smul.u32 %s26, 256
        %s249 = sshra.s32 %s248, 3
        %s250 = sand.u32 %s248, 7
        %s251 = smul.addr %s249, 4
        %s252 = scalar_lea.vmem [#allocation6], %s251
        %v253 = vld [vmem:[%s252] sm:$0xf]
        %v254 = vld [vmem:[%s252 + $0x4] sm:$0xf]
        %v255 = vld [vmem:[%s252 + $0x8] sm:$0xf]
        %v256 = vld [vmem:[%s252 + $0xc] sm:$0xf]
        %v257 = vld [vmem:[%s252 + $0x10] sm:$0xf]
        %v258 = vld [vmem:[%s252 + $0x14] sm:$0xf]
        %v259 = vld [vmem:[%s252 + $0x18] sm:$0xf]
        %v260 = vld [vmem:[%s252 + $0x1c] sm:$0xf]
        %v261 = vld [vmem:[%s252 + $0x20] sm:$0xf]
        %v262 = vld [vmem:[%s252 + $0x24] sm:$0xf]
        %v263 = vld [vmem:[%s252 + $0x28] sm:$0xf]
        %v264 = vld [vmem:[%s252 + $0x2c] sm:$0xf]
        %v265 = vld [vmem:[%s252 + $0x30] sm:$0xf]
        %v266 = vld [vmem:[%s252 + $0x34] sm:$0xf]
        %v267 = vld [vmem:[%s252 + $0x38] sm:$0xf]
        %v268 = vld [vmem:[%s252 + $0x3c] sm:$0xf]
        %v269 = vld [vmem:[%s252 + $0x40] sm:$0xf]
        %v270 = vld [vmem:[%s252 + $0x44] sm:$0xf]
        %v271 = vld [vmem:[%s252 + $0x48] sm:$0xf]
        %v272 = vld [vmem:[%s252 + $0x4c] sm:$0xf]
        %v273 = vld [vmem:[%s252 + $0x50] sm:$0xf]
        %v274 = vld [vmem:[%s252 + $0x54] sm:$0xf]
        %v275 = vld [vmem:[%s252 + $0x58] sm:$0xf]
        %v276 = vld [vmem:[%s252 + $0x5c] sm:$0xf]
        %v277 = vld [vmem:[%s252 + $0x60] sm:$0xf]
        %v278 = vld [vmem:[%s252 + $0x64] sm:$0xf]
        %v279 = vld [vmem:[%s252 + $0x68] sm:$0xf]
        %v280 = vld [vmem:[%s252 + $0x6c] sm:$0xf]
        %v281 = vld [vmem:[%s252 + $0x70] sm:$0xf]
        %v282 = vld [vmem:[%s252 + $0x74] sm:$0xf]
        %v283 = vld [vmem:[%s252 + $0x78] sm:$0xf]
        %v284 = vld [vmem:[%s252 + $0x7c] sm:$0xf]
        %v285 = vld [vmem:[#allocation2] sm:$0xff]
        %v286 = vld [vmem:[#allocation2 + $0x8] sm:$0xff]
        %v287 = vld [vmem:[#allocation2 + $0x10] sm:$0xff]
        %v288 = vld [vmem:[#allocation2 + $0x18] sm:$0xff]
        %v289 = vld [vmem:[#allocation2 + $0x20] sm:$0xff]
        %v290 = vld [vmem:[#allocation2 + $0x28] sm:$0xff]
        %v291 = vld [vmem:[#allocation2 + $0x30] sm:$0xff]
        %v292 = vld [vmem:[#allocation2 + $0x38] sm:$0xff]
        %v293 = vld [vmem:[#allocation2 + $0x40] sm:$0xff]
        %v294 = vld [vmem:[#allocation2 + $0x48] sm:$0xff]
        %v295 = vld [vmem:[#allocation2 + $0x50] sm:$0xff]
        %v296 = vld [vmem:[#allocation2 + $0x58] sm:$0xff]
        %v297 = vld [vmem:[#allocation2 + $0x60] sm:$0xff]
        %v298 = vld [vmem:[#allocation2 + $0x68] sm:$0xff]
        %v299 = vld [vmem:[#allocation2 + $0x70] sm:$0xff]
        %v300 = vld [vmem:[#allocation2 + $0x78] sm:$0xff]
        %v301 = vld [vmem:[%s196] sm:$0xff]
        %v302 = vld [vmem:[%s196 + $0x8] sm:$0xff]
        %v303 = vld [vmem:[%s196 + $0x10] sm:$0xff]
        %v304 = vld [vmem:[%s196 + $0x18] sm:$0xff]
        %v305 = vld [vmem:[%s196 + $0x20] sm:$0xff]
        %v306 = vld [vmem:[%s196 + $0x28] sm:$0xff]
        %v307 = vld [vmem:[%s196 + $0x30] sm:$0xff]
        %v308 = vld [vmem:[%s196 + $0x38] sm:$0xff]
        %v309 = vld [vmem:[%s196 + $0x40] sm:$0xff]
        %v310 = vld [vmem:[%s196 + $0x48] sm:$0xff]
        %v311 = vld [vmem:[%s196 + $0x50] sm:$0xff]
        %v312 = vld [vmem:[%s196 + $0x58] sm:$0xff]
        %v313 = vld [vmem:[%s196 + $0x60] sm:$0xff]
        %v314 = vld [vmem:[%s196 + $0x68] sm:$0xff]
        %v315 = vld [vmem:[%s196 + $0x70] sm:$0xff]
        %v316 = vld [vmem:[%s196 + $0x78] sm:$0xff]
        %v333 = vunpack.c.l.b16 %v301
        %v334 = vunpack.c.h.b16 %v301
        %v335 = vunpack.c.l.b16 %v302
        %v336 = vunpack.c.h.b16 %v302
        %v337 = vunpack.c.l.b16 %v303
        %v338 = vunpack.c.h.b16 %v303
        %v339 = vunpack.c.l.b16 %v304
        %v340 = vunpack.c.h.b16 %v304
        %v341 = vunpack.c.l.b16 %v305
        %v342 = vunpack.c.h.b16 %v305
        %v343 = vunpack.c.l.b16 %v306
        %v344 = vunpack.c.h.b16 %v306
        %v345 = vunpack.c.l.b16 %v307
        %v346 = vunpack.c.h.b16 %v307
        %v347 = vunpack.c.l.b16 %v308
        %v348 = vunpack.c.h.b16 %v308
        %v349 = vunpack.c.l.b16 %v309
        %v350 = vunpack.c.h.b16 %v309
        %v351 = vunpack.c.l.b16 %v310
        %v352 = vunpack.c.h.b16 %v310
        %v353 = vunpack.c.l.b16 %v311
        %v354 = vunpack.c.h.b16 %v311
        %v355 = vunpack.c.l.b16 %v312
        %v356 = vunpack.c.h.b16 %v312
        %v357 = vunpack.c.l.b16 %v313
        %v358 = vunpack.c.h.b16 %v313
        %v359 = vunpack.c.l.b16 %v314
        %v360 = vunpack.c.h.b16 %v314
        %v361 = vunpack.c.l.b16 %v315
        %v362 = vunpack.c.h.b16 %v315
        %v363 = vunpack.c.l.b16 %v316
        %v364 = vunpack.c.h.b16 %v316
        %v365 = vpack.c.b16 %v335, %v333
        %v366 = vpack.c.b16 %v336, %v334
        %v367 = vpack.c.b16 %v339, %v337
        %v368 = vpack.c.b16 %v340, %v338
        %v369 = vpack.c.b16 %v343, %v341
        %v370 = vpack.c.b16 %v344, %v342
        %v371 = vpack.c.b16 %v347, %v345
        %v372 = vpack.c.b16 %v348, %v346
        %v373 = vpack.c.b16 %v351, %v349
        %v374 = vpack.c.b16 %v352, %v350
        %v375 = vpack.c.b16 %v355, %v353
        %v376 = vpack.c.b16 %v356, %v354
        %v377 = vpack.c.b16 %v359, %v357
        %v378 = vpack.c.b16 %v360, %v358
        %v379 = vpack.c.b16 %v363, %v361
        %v380 = vpack.c.b16 %v364, %v362
        %v429 = vunpack.c.l.b16 %v253
        %v430 = vunpack.c.l.b16 %v254
        %v431 = vunpack.c.l.b16 %v255
        %v432 = vunpack.c.l.b16 %v256
        %v433 = vunpack.c.l.b16 %v257
        %v434 = vunpack.c.l.b16 %v258
        %v435 = vunpack.c.l.b16 %v259
        %v436 = vunpack.c.l.b16 %v260
        %v437 = vunpack.c.l.b16 %v261
        %v438 = vunpack.c.l.b16 %v262
        %v439 = vunpack.c.l.b16 %v263
        %v440 = vunpack.c.l.b16 %v264
        %v441 = vunpack.c.l.b16 %v265
        %v442 = vunpack.c.l.b16 %v266
        %v443 = vunpack.c.l.b16 %v267
        %v444 = vunpack.c.l.b16 %v268
        %v445 = vunpack.c.l.b16 %v269
        %v446 = vunpack.c.l.b16 %v270
        %v447 = vunpack.c.l.b16 %v271
        %v448 = vunpack.c.l.b16 %v272
        %v449 = vunpack.c.l.b16 %v273
        %v450 = vunpack.c.l.b16 %v274
        %v451 = vunpack.c.l.b16 %v275
        %v452 = vunpack.c.l.b16 %v276
        %v453 = vunpack.c.l.b16 %v277
        %v454 = vunpack.c.l.b16 %v278
        %v455 = vunpack.c.l.b16 %v279
        %v456 = vunpack.c.l.b16 %v280
        %v457 = vunpack.c.l.b16 %v281
        %v458 = vunpack.c.l.b16 %v282
        %v459 = vunpack.c.l.b16 %v283
        %v460 = vunpack.c.l.b16 %v284
        %v461 = vpack.c.b16 %v430, %v429
        %v462 = vpack.c.b16 %v432, %v431
        %v463 = vpack.c.b16 %v434, %v433
        %v464 = vpack.c.b16 %v436, %v435
        %v465 = vpack.c.b16 %v438, %v437
        %v466 = vpack.c.b16 %v440, %v439
        %v467 = vpack.c.b16 %v442, %v441
        %v468 = vpack.c.b16 %v444, %v443
        %v469 = vpack.c.b16 %v446, %v445
        %v470 = vpack.c.b16 %v448, %v447
        %v471 = vpack.c.b16 %v450, %v449
        %v472 = vpack.c.b16 %v452, %v451
        %v473 = vpack.c.b16 %v454, %v453
        %v474 = vpack.c.b16 %v456, %v455
        %v475 = vpack.c.b16 %v458, %v457
        %v476 = vpack.c.b16 %v460, %v459
        %493 = vmatpush.bf16.msra.mxu0 %v468
        %494 = vmatpush.bf16.msra.mxu0 %v467
        %495 = vmatpush.bf16.msra.mxu0 %v466
        %496 = vmatpush.bf16.msra.mxu0 %v465
        %497 = vmatpush.bf16.msra.mxu0 %v464
        %498 = vmatpush.bf16.msra.mxu0 %v463
        %499 = vmatpush.bf16.msra.mxu0 %v462
        %500 = vmatpush.bf16.msra.mxu0 %v461
        %501 = vmatmul.bf16.gmra.mxu0 %v365
        %v502 = vpop.f32.mrf.mxu0
        %v503 = vadd.f32 0.0, %v502
        %v504 = vpop.f32.mrf.mxu0
        %v505 = vadd.f32 0.0, %v504
        %506 = vmatmul.bf16.gmra.mxu0 %v367
        %v507 = vpop.f32.mrf.mxu0
        %v508 = vadd.f32 0.0, %v507
        %v509 = vpop.f32.mrf.mxu0
        %v510 = vadd.f32 0.0, %v509
        %511 = vmatmul.bf16.gmra.mxu0 %v369
        %v512 = vpop.f32.mrf.mxu0
        %v513 = vadd.f32 0.0, %v512
        %v514 = vpop.f32.mrf.mxu0
        %v515 = vadd.f32 0.0, %v514
        %516 = vmatmul.bf16.gmra.mxu0 %v371
        %v517 = vpop.f32.mrf.mxu0
        %v518 = vadd.f32 0.0, %v517
        %v519 = vpop.f32.mrf.mxu0
        %v520 = vadd.f32 0.0, %v519
        %521 = vmatmul.bf16.gmra.mxu0 %v373
        %v522 = vpop.f32.mrf.mxu0
        %v523 = vadd.f32 0.0, %v522
        %v524 = vpop.f32.mrf.mxu0
        %v525 = vadd.f32 0.0, %v524
        %526 = vmatmul.bf16.gmra.mxu0 %v375
        %v527 = vpop.f32.mrf.mxu0
        %v528 = vadd.f32 0.0, %v527
        %v529 = vpop.f32.mrf.mxu0
        %v530 = vadd.f32 0.0, %v529
        %531 = vmatmul.bf16.gmra.mxu0 %v377
        %v532 = vpop.f32.mrf.mxu0
        %v533 = vadd.f32 0.0, %v532
        %v534 = vpop.f32.mrf.mxu0
        %v535 = vadd.f32 0.0, %v534
        %536 = vmatmul.bf16.gmra.mxu0 %v379
        %v537 = vpop.f32.mrf.mxu0
        %v538 = vadd.f32 0.0, %v537
        %v539 = vpop.f32.mrf.mxu0
        %v540 = vadd.f32 0.0, %v539
        %541 = vdwg.mxu0
        %542 = vmatpush.bf16.msra.mxu0 %v476
        %543 = vmatpush.bf16.msra.mxu0 %v475
        %544 = vmatpush.bf16.msra.mxu0 %v474
        %545 = vmatpush.bf16.msra.mxu0 %v473
        %546 = vmatpush.bf16.msra.mxu0 %v472
        %547 = vmatpush.bf16.msra.mxu0 %v471
        %548 = vmatpush.bf16.msra.mxu0 %v470
        %549 = vmatpush.bf16.msra.mxu0 %v469
        %550 = vmatmul.bf16.gmra.mxu0 %v366
        %v551 = vpop.f32.mrf.mxu0
        %v552 = vadd.f32 %v503, %v551
        %v553 = vpop.f32.mrf.mxu0
        %v554 = vadd.f32 %v505, %v553
        %555 = vmatmul.bf16.gmra.mxu0 %v368
        %v556 = vpop.f32.mrf.mxu0
        %v557 = vadd.f32 %v508, %v556
        %v558 = vpop.f32.mrf.mxu0
        %v559 = vadd.f32 %v510, %v558
        %560 = vmatmul.bf16.gmra.mxu0 %v370
        %v561 = vpop.f32.mrf.mxu0
        %v562 = vadd.f32 %v513, %v561
        %v563 = vpop.f32.mrf.mxu0
        %v564 = vadd.f32 %v515, %v563
        %565 = vmatmul.bf16.gmra.mxu0 %v372
        %v566 = vpop.f32.mrf.mxu0
        %v567 = vadd.f32 %v518, %v566
        %v568 = vpop.f32.mrf.mxu0
        %v569 = vadd.f32 %v520, %v568
        %570 = vmatmul.bf16.gmra.mxu0 %v374
        %v571 = vpop.f32.mrf.mxu0
        %v572 = vadd.f32 %v523, %v571
        %v573 = vpop.f32.mrf.mxu0
        %v574 = vadd.f32 %v525, %v573
        %575 = vmatmul.bf16.gmra.mxu0 %v376
        %v576 = vpop.f32.mrf.mxu0
        %v577 = vadd.f32 %v528, %v576
        %v578 = vpop.f32.mrf.mxu0
        %v579 = vadd.f32 %v530, %v578
        %580 = vmatmul.bf16.gmra.mxu0 %v378
        %v581 = vpop.f32.mrf.mxu0
        %v582 = vadd.f32 %v533, %v581
        %v583 = vpop.f32.mrf.mxu0
        %v584 = vadd.f32 %v535, %v583
        %585 = vmatmul.bf16.gmra.mxu0 %v380
        %v586 = vpop.f32.mrf.mxu0
        %v587 = vadd.f32 %v538, %v586
        %v588 = vpop.f32.mrf.mxu0
        %v589 = vadd.f32 %v540, %v588
        %590 = vdwg.mxu0
        %v591 = vadd.f32 %v285, %v552
        %v592 = vadd.f32 %v286, %v554
        %v593 = vadd.f32 %v287, %v557
        %v594 = vadd.f32 %v288, %v559
        %v595 = vadd.f32 %v289, %v562
        %v596 = vadd.f32 %v290, %v564
        %v597 = vadd.f32 %v291, %v567
        %v598 = vadd.f32 %v292, %v569
        %v599 = vadd.f32 %v293, %v572
        %v600 = vadd.f32 %v294, %v574
        %v601 = vadd.f32 %v295, %v577
        %v602 = vadd.f32 %v296, %v579
        %v603 = vadd.f32 %v297, %v582
        %v604 = vadd.f32 %v298, %v584
        %v605 = vadd.f32 %v299, %v587
        %v606 = vadd.f32 %v300, %v589
        %607 = vst [vmem:[#allocation2] sm:$0xff] %v591
        %608 = vst [vmem:[#allocation2 + $0x8] sm:$0xff] %v592
        %609 = vst [vmem:[#allocation2 + $0x10] sm:$0xff] %v593
        %610 = vst [vmem:[#allocation2 + $0x18] sm:$0xff] %v594
        %611 = vst [vmem:[#allocation2 + $0x20] sm:$0xff] %v595
        %612 = vst [vmem:[#allocation2 + $0x28] sm:$0xff] %v596
        %613 = vst [vmem:[#allocation2 + $0x30] sm:$0xff] %v597
        %614 = vst [vmem:[#allocation2 + $0x38] sm:$0xff] %v598
        %615 = vst [vmem:[#allocation2 + $0x40] sm:$0xff] %v599
        %616 = vst [vmem:[#allocation2 + $0x48] sm:$0xff] %v600
        %617 = vst [vmem:[#allocation2 + $0x50] sm:$0xff] %v601
        %618 = vst [vmem:[#allocation2 + $0x58] sm:$0xff] %v602
        %619 = vst [vmem:[#allocation2 + $0x60] sm:$0xff] %v603
        %620 = vst [vmem:[#allocation2 + $0x68] sm:$0xff] %v604
        %621 = vst [vmem:[#allocation2 + $0x70] sm:$0xff] %v605
        %622 = vst [vmem:[#allocation2 + $0x78] sm:$0xff] %v606
        // Predicated region
        $region45: #{tpu_custom_call.1} parent=31 // pred_check
          %p623 = pneg %p228
        $region46: #{tpu_custom_call.1} parent=31 // pred_check_branch
          %625 = sbr.rel (%p623) target = $region48
        $region47: #{tpu_custom_call.1} parent=31 // pred_region
          %v626 = vld [vmem:[#allocation2] sm:$0xff]
          %v627 = vld [vmem:[#allocation2 + $0x8] sm:$0xff]
          %v628 = vld [vmem:[#allocation2 + $0x10] sm:$0xff]
          %v629 = vld [vmem:[#allocation2 + $0x18] sm:$0xff]
          %v630 = vld [vmem:[#allocation2 + $0x20] sm:$0xff]
          %v631 = vld [vmem:[#allocation2 + $0x28] sm:$0xff]
          %v632 = vld [vmem:[#allocation2 + $0x30] sm:$0xff]
          %v633 = vld [vmem:[#allocation2 + $0x38] sm:$0xff]
          %v634 = vld [vmem:[#allocation2 + $0x40] sm:$0xff]
          %v635 = vld [vmem:[#allocation2 + $0x48] sm:$0xff]
          %v636 = vld [vmem:[#allocation2 + $0x50] sm:$0xff]
          %v637 = vld [vmem:[#allocation2 + $0x58] sm:$0xff]
          %v638 = vld [vmem:[#allocation2 + $0x60] sm:$0xff]
          %v639 = vld [vmem:[#allocation2 + $0x68] sm:$0xff]
          %v640 = vld [vmem:[#allocation2 + $0x70] sm:$0xff]
          %v641 = vld [vmem:[#allocation2 + $0x78] sm:$0xff]
          %v642 = vld [vmem:[%s2] sm:$0x1]
          %v644 = vperm.slane %v642, 0
          %v646 = vadd.f32 %v626, %v644
          %v647 = vadd.f32 %v627, %v644
          %v648 = vadd.f32 %v628, %v644
          %v649 = vadd.f32 %v629, %v644
          %v650 = vadd.f32 %v630, %v644
          %v651 = vadd.f32 %v631, %v644
          %v652 = vadd.f32 %v632, %v644
          %v653 = vadd.f32 %v633, %v644
          %v654 = vadd.f32 %v634, %v644
          %v655 = vadd.f32 %v635, %v644
          %v656 = vadd.f32 %v636, %v644
          %v657 = vadd.f32 %v637, %v644
          %v658 = vadd.f32 %v638, %v644
          %v659 = vadd.f32 %v639, %v644
          %v660 = vadd.f32 %v640, %v644
          %v661 = vadd.f32 %v641, %v644
          %v662 = vmax.f32 %v646, 0.0
          %v663 = vmax.f32 %v647, 0.0
          %v664 = vmax.f32 %v648, 0.0
          %v665 = vmax.f32 %v649, 0.0
          %v666 = vmax.f32 %v650, 0.0
          %v667 = vmax.f32 %v651, 0.0
          %v668 = vmax.f32 %v652, 0.0
          %v669 = vmax.f32 %v653, 0.0
          %v670 = vmax.f32 %v654, 0.0
          %v671 = vmax.f32 %v655, 0.0
          %v672 = vmax.f32 %v656, 0.0
          %v673 = vmax.f32 %v657, 0.0
          %v674 = vmax.f32 %v658, 0.0
          %v675 = vmax.f32 %v659, 0.0
          %v676 = vmax.f32 %v660, 0.0
          %v677 = vmax.f32 %v661, 0.0
          %v678 = vpack.c.bf16 %v662, %v662
          %v679 = vpack.c.bf16 %v663, %v663
          %v680 = vpack.c.bf16 %v664, %v664
          %v681 = vpack.c.bf16 %v665, %v665
          %v682 = vpack.c.bf16 %v666, %v666
          %v683 = vpack.c.bf16 %v667, %v667
          %v684 = vpack.c.bf16 %v668, %v668
          %v685 = vpack.c.bf16 %v669, %v669
          %v686 = vpack.c.bf16 %v670, %v670
          %v687 = vpack.c.bf16 %v671, %v671
          %v688 = vpack.c.bf16 %v672, %v672
          %v689 = vpack.c.bf16 %v673, %v673
          %v690 = vpack.c.bf16 %v674, %v674
          %v691 = vpack.c.bf16 %v675, %v675
          %v692 = vpack.c.bf16 %v676, %v676
          %v693 = vpack.c.bf16 %v677, %v677
          %694 = vst [vmem:[%s224] sm:$0xf] %v678
          %695 = vst [vmem:[%s224 + $0x4] sm:$0xf] %v679
          %696 = vst [vmem:[%s224 + $0x8] sm:$0xf] %v680
          %697 = vst [vmem:[%s224 + $0xc] sm:$0xf] %v681
          %698 = vst [vmem:[%s224 + $0x10] sm:$0xf] %v682
          %699 = vst [vmem:[%s224 + $0x14] sm:$0xf] %v683
          %700 = vst [vmem:[%s224 + $0x18] sm:$0xf] %v684
          %701 = vst [vmem:[%s224 + $0x1c] sm:$0xf] %v685
          %702 = vst [vmem:[%s224 + $0x20] sm:$0xf] %v686
          %703 = vst [vmem:[%s224 + $0x24] sm:$0xf] %v687
          %704 = vst [vmem:[%s224 + $0x28] sm:$0xf] %v688
          %705 = vst [vmem:[%s224 + $0x2c] sm:$0xf] %v689
          %706 = vst [vmem:[%s224 + $0x30] sm:$0xf] %v690
          %707 = vst [vmem:[%s224 + $0x34] sm:$0xf] %v691
          %708 = vst [vmem:[%s224 + $0x38] sm:$0xf] %v692
          %709 = vst [vmem:[%s224 + $0x3c] sm:$0xf] %v693
        $region48: #{tpu_custom_call.1} parent=31 // pred_fallthru
          _
        %s710 = sand.u32 %s111, 1
        %s711 = scalar_lea.sflag [#allocation5], %s710
        %s712 = sand.u32 %s111, 1
        %s713 = smul.addr %s712, 64
        %s714 = scalar_lea.vmem [#allocation8], %s713
        // Predicated region
        $region49: #{tpu_custom_call.1} parent=31 // pred_check
          %p715 = pneg %p121
        $region50: #{tpu_custom_call.1} parent=31 // pred_check_branch
          %717 = sbr.rel (%p715) target = $region52
        $region51: #{tpu_custom_call.1} parent=31 // pred_region
          %s718 = smul.u32 16, %s25
          %720 = vsyncadd %s711, 0
          %s721 = smul.addr %s718, 4
          %s722 = scalar_lea.hbm %s3, %s721
          %s723 = sshll.u32 %s714, 4
          %s724 = int_to_ptr.vmem [resolvable:$true] %s723
          %s725 = sshll.u32 %s722, 4
          %s726 = int_to_ptr.hbm [resolvable:$true] %s725
          %731 = dma.vmem_to_hbm [thread:$0]  %s724, 1024, %s726, %s711, 64, 64, 4
        $region52: #{tpu_custom_call.1} parent=31 // pred_fallthru
          _
      $region32: #{tpu_custom_call.1} parent=5 // pred_fallthru
        _
      %p732 = scmp.le.s32.totalorder 2, %s16
      // Predicated region
      $region53: #{tpu_custom_call.1} parent=5 // pred_check
        %p733 = pneg %p732
      $region54: #{tpu_custom_call.1} parent=5 // pred_check_branch
        %735 = sbr.rel (%p733) target = $region56
      $region55: #{tpu_custom_call.1} parent=5 // pred_region
        %s736 = ssub.s32 %s16, 2
        // Predicated region
        $region57: #{tpu_custom_call.1} parent=55 // pred_check
          %p737 = pneg %p127
        $region58: #{tpu_custom_call.1} parent=55 // pred_check_branch
          %739 = sbr.rel (%p737) target = $region60
        $region59: #{tpu_custom_call.1} parent=55 // pred_region
          %s740 = sand.u32 %s112, 1
          %s741 = scalar_lea.sflag [#allocation5], %s740
          %s742 = sand.u32 %s112, 1
          %s743 = smul.addr %s742, 64
          %s744 = scalar_lea.vmem [#allocation8], %s743
          %746 = dma.done %s741, 1024
        $region60: #{tpu_custom_call.1} parent=55 // pred_fallthru
          _
      $region56: #{tpu_custom_call.1} parent=5 // pred_fallthru
        _
    $region6: #{tpu_custom_call.1} parent=1 // loop_footer
      %s20 = sadd.s32 1, %s16
    $region7: #{tpu_custom_call.1} parent=1 // loop_footer_branch
      %15 = sbr.rel target = $region3
    $region8: #{tpu_custom_call.1} parent=1 // loop_exit
      _
    %747 = vsyncpa [#allocation4], 1
    %s748 = scalar_lea.sflag [#allocation4], 1
    %749 = vsyncpa %s748, 1
    %750 = vsyncpa [#allocation7], 1
    %751 = vsyncpa [#allocation5], 1
    %s752 = scalar_lea.sflag [#allocation5], 1
    %753 = vsyncpa %s752, 1

</llo_original>
